<compile_context>
chip_gen: v6e
topology: v6e:2x2x1
jax: 0.10.0
libtpu: 0.0.40
codegen_flags: <defaults>
</compile_context>

<pallas_src>
import functools
import math

import jax
import jax.numpy as jnp
from jax.experimental import pallas as pl
from jax.experimental.pallas import tpu as pltpu

BN_EPS = 1e-5
_MATMUL_DTYPE = jnp.float32     # bf16 possible on v6e/v7x, gated on tolerance


def _round_up(x, m):
    return (x + m - 1) // m * m


def _vmem_limit_bytes():
    """Generation-aware scoped-VMEM limit (v5e/v6e: 128 MiB phys, v7x: 64 MiB)."""
    cap = 64 * 1024 * 1024
    try:
        cap = int(pltpu.get_tpu_info().vmem_capacity_bytes)
    except Exception:           # emulation / older jax: assume smallest (v7x)
        pass
    return min(int(cap * 3 // 4), 96 * 1024 * 1024)


def _tile_vmem_bytes(th, ws, k4, cout, itemsize):
    """Per-grid-step VMEM working-set estimate with real (8,128) padding."""
    lane = lambda d: _round_up(d, 128)
    sub = lambda d: _round_up(d, 8)
    lb = _round_up((th + 1) * ws + 1, 128)
    la = th * ws
    band = sub(k4) * lb * itemsize * 2            # double-buffered input block
    wcat = sub(4 * cout) * lane(k4) * itemsize * 2
    pmat = sub(4 * cout) * lane(lb) * 4           # matmul result (f32 value)
    acc = sub(cout) * lane(la) * 4 * 3            # acc + elementwise temps
    outb = sub(cout) * lane(la) * 4 * 2           # double-buffered output block
    vecs = 2 * 8 * lane(la) * 4 + 4 * 8 * 128 * 4  # mask / scale / shift
    return band + wcat + pmat + acc + outb + vecs


def _pick_tile_rows(ho, ws, k4, cout, budget, itemsize):
    """Largest divisor of Ho whose working set fits the per-step budget."""
    best = 1
    for th in range(1, ho + 1):
        if ho % th:
            continue
        if _tile_vmem_bytes(th, ws, k4, cout, itemsize) <= budget:
            best = th
    return best


# -----------------------------------------------------------------------------
# In-kernel conv tile (lane-dense).
#
# band_ref : (1, 1, k4, Lb)   s2d band, rows folded into lanes (stride ws)
# w_ref    : (4*cout, k4)     packed weight, row block t = 2*di + dj
#
# 3x3 stride-2 conv == 2x2 stride-1 conv over the s2d view.  All 4 taps are
# evaluated by ONE matmul; tap (di, dj) is the lane-shifted slice at offset
# di*ws + dj of the corresponding cout-row block of the result.
# -----------------------------------------------------------------------------
def _conv_tile(band_ref, w_ref, *, th, ws, cout):
    band = band_ref[0, 0]                                     # (k4, Lb)
    w = w_ref[...]                                            # (4*cout, k4)
    p = jnp.dot(w, band, preferred_element_type=jnp.float32)  # (4*cout, Lb)
    la = th * ws
    acc = (p[0 * cout:1 * cout, 0:la]
           + p[1 * cout:2 * cout, 1:1 + la]
           + p[2 * cout:3 * cout, ws:ws + la]
           + p[3 * cout:4 * cout, ws + 1:ws + 1 + la])
    return acc                                                # (cout, la) f32


# -----------------------------------------------------------------------------
# Pass 1: conv tile -> per-(batch, channel) sum / sum-of-squares.
# -----------------------------------------------------------------------------
def _conv_stats_kernel(band_ref, w_ref, mask_ref, stats_ref, *, th, ws, cout):
    acc = _conv_tile(band_ref, w_ref, th=th, ws=ws, cout=cout)   # (cout, la)
    m = mask_ref[...]                                            # (1, la)
    am = acc * m
    psum = jnp.sum(am, axis=-1, keepdims=True)                   # (cout, 1)
    psq = jnp.sum(am * acc, axis=-1, keepdims=True)              # (cout, 1)

    @pl.when(pl.program_id(1) == 0)
    def _init():
        stats_ref[...] = jnp.zeros(stats_ref.shape, stats_ref.dtype)

    stats_ref[0, :, 0:1] += psum
    stats_ref[0, :, 1:2] += psq


# -----------------------------------------------------------------------------
# Pass 2: conv tile (recomputed) -> y*scale + shift -> optional exact GELU.
# -----------------------------------------------------------------------------
def _conv_bn_act_kernel(band_ref, w_ref, scale_ref, shift_ref, o_ref,
                        *, th, ws, cout, apply_gelu):
    acc = _conv_tile(band_ref, w_ref, th=th, ws=ws, cout=cout)   # (cout, la)
    y = acc * scale_ref[...] + shift_ref[...]                    # (cout,1) bcast
    if apply_gelu:
        inv_sqrt2 = jnp.float32(1.0 / math.sqrt(2.0))
        y = 0.5 * y * (1.0 + jax.lax.erf(y * inv_sqrt2))
    o_ref[0, 0] = y.astype(o_ref.dtype)


# -----------------------------------------------------------------------------
# Host-side prep (cheap XLA ops, ~1x input bytes): pad + s2d + banding.
# -----------------------------------------------------------------------------
def _band_from_nchw(x_nchw, th):
    """(B, C, H, W) -> banded s2d (B, n_h, 4C, Lb), W in lanes, halo duplicated."""
    B, C, H, W = x_nchw.shape
    assert H % 2 == 0 and W % 2 == 0, "StemConv expects even H, W"
    ho, wo = H // 2, W // 2
    hs, ws = ho + 1, wo + 1
    xp = jnp.pad(x_nchw, ((0, 0), (0, 0), (1, 1), (1, 1)))        # (B,C,2hs,2ws)
    xs = xp.reshape(B, C, hs, 2, ws, 2)                           # b,c,r,dr,j,dc
    xs = xs.transpose(0, 2, 3, 5, 1, 4).reshape(B, hs, 4 * C, ws)  # k=(dr,dc,c)

    n_h = ho // th
    main = xs[:, :ho].reshape(B, n_h, th, 4 * C, ws)
    halo = xs[:, th::th][:, :, None]                              # (B,n_h,1,4C,ws)
    band = jnp.concatenate([main, halo], axis=2)                  # (B,n_h,th+1,4C,ws)
    band = band.transpose(0, 1, 3, 2, 4).reshape(B, n_h, 4 * C, (th + 1) * ws)

    lb = _round_up((th + 1) * ws + 1, 128)
    band = jnp.pad(band, ((0, 0), (0, 0), (0, 0), (0, lb - (th + 1) * ws)))
    return band.astype(_MATMUL_DTYPE), lb


def _pack_weight(w_oihw):
    """PyTorch (Cout, Cin, 3, 3) -> (4*Cout, 4*Cin) matching the s2d band."""
    cout, cin, _, _ = w_oihw.shape
    w6 = jnp.zeros((2, 2, cout, 2, 2, cin), w_oihw.dtype)
    for di in range(2):
        for dr in range(2):
            kh = 2 * di + dr
            if kh > 2:
                continue
            for dj in range(2):
                for dc in range(2):
                    kw = 2 * dj + dc
                    if kw > 2:
                        continue
                    w6 = w6.at[di, dj, :, dr, dc, :].set(w_oihw[:, :, kh, kw])
    return w6.reshape(4 * cout, 4 * cin).astype(_MATMUL_DTYPE)


def _conv_bn_layer(x_nchw, w_oihw, gamma, beta, *, apply_gelu):
    B, cin, H, W = x_nchw.shape
    cout = w_oihw.shape[0]
    assert w_oihw.shape[1] == cin
    ho, wo = H // 2, W // 2
    ws = wo + 1
    k4 = 4 * cin

    itemsize = jnp.dtype(_MATMUL_DTYPE).itemsize
    vmem_limit = _vmem_limit_bytes()
    th = _pick_tile_rows(ho, ws, k4, cout, budget=vmem_limit // 2,
                         itemsize=itemsize)
    n_h = ho // th
    la = th * ws

    band, lb = _band_from_nchw(x_nchw, th)
    w_cat = _pack_weight(w_oihw)

    # mask of valid output columns inside the lane-folded rows (col wo is junk)
    col = jnp.tile(jnp.arange(ws, dtype=jnp.int32), (th,))
    mask = (col < wo).astype(jnp.float32).reshape(1, la)

    grid = (B, n_h)
    band_spec = pl.BlockSpec((1, 1, k4, lb), lambda b, i: (b, i, 0, 0))
    w_spec = pl.BlockSpec((4 * cout, k4), lambda b, i: (0, 0))      # resident
    mask_spec = pl.BlockSpec((1, la), lambda b, i: (0, 0))          # resident
    vec_spec = pl.BlockSpec((cout, 1), lambda b, i: (0, 0))         # resident

    # ---- pass 1: conv + per-(batch, channel) sum / sum-of-squares ----
    stats = pl.pallas_call(
        functools.partial(_conv_stats_kernel, th=th, ws=ws, cout=cout),
        out_shape=jax.ShapeDtypeStruct((B, cout, 2), jnp.float32),
        grid=grid,
        in_specs=[band_spec, w_spec, mask_spec],
        out_specs=pl.BlockSpec((1, cout, 2), lambda b, i: (b, 0, 0)),
        compiler_params=pltpu.CompilerParams(
            dimension_semantics=("parallel", "arbitrary"),
            vmem_limit_bytes=vmem_limit),
    )(band, w_cat, mask)

    # ---- fold global batch stats into per-channel scale / shift ----
    s = jnp.sum(stats, axis=0)                       # (cout, 2)
    n = jnp.float32(B * ho * wo)
    mean = s[:, 0:1] / n                             # (cout, 1)
    var = jnp.maximum(s[:, 1:2] / n - mean * mean, 0.0)   # biased var (PyTorch BN)
    scale = gamma.reshape(cout, 1) * jax.lax.rsqrt(var + BN_EPS)
    shift = beta.reshape(cout, 1) - mean * scale

    # ---- pass 2: conv (recomputed) + BN + optional GELU ----
    out = pl.pallas_call(
        functools.partial(_conv_bn_act_kernel, th=th, ws=ws, cout=cout,
                          apply_gelu=apply_gelu),
        out_shape=jax.ShapeDtypeStruct((B, n_h, cout, la), jnp.float32),
        grid=grid,
        in_specs=[band_spec, w_spec, vec_spec, vec_spec],
        out_specs=pl.BlockSpec((1, 1, cout, la), lambda b, i: (b, i, 0, 0)),
        compiler_params=pltpu.CompilerParams(
            dimension_semantics=("parallel", "parallel"),
            vmem_limit_bytes=vmem_limit),
    )(band, w_cat, scale, shift)

    # (B, n_h, cout, th*ws) -> NCHW (B, cout, ho, wo), dropping the junk column
    out = out.reshape(B, n_h, cout, th, ws).transpose(0, 2, 1, 3, 4)
    out = out.reshape(B, cout, ho, ws)[:, :, :, :wo]
    return out


# -----------------------------------------------------------------------------
# Module-level forward + params
# -----------------------------------------------------------------------------
def init_stemconv_params(key, in_channels, out_channels):
    mid = out_channels // 2
    k0, k1, k2, k3, k4, k5, k6, k7 = jax.random.split(key, 8)
    return {
        "conv0_w": jax.random.normal(k0, (mid, in_channels, 3, 3), jnp.float32) * 0.1,
        "conv0_b": jax.random.normal(k1, (mid,), jnp.float32) * 0.1,   # cancels under BN
        "norm0_gamma": 1.0 + 0.1 * jax.random.normal(k2, (mid,), jnp.float32),
        "norm0_beta": 0.1 * jax.random.normal(k3, (mid,), jnp.float32),
        "conv1_w": jax.random.normal(k4, (out_channels, mid, 3, 3), jnp.float32) * 0.1,
        "conv1_b": jax.random.normal(k5, (out_channels,), jnp.float32) * 0.1,
        "norm1_gamma": 1.0 + 0.1 * jax.random.normal(k6, (out_channels,), jnp.float32),
        "norm1_beta": 0.1 * jax.random.normal(k7, (out_channels,), jnp.float32),
    }


def stemconv_forward(params, x_nchw):
    """x_nchw: (B, Cin, H, W) f32 -> (out (B, H/4*W/4, Cout), H/4, W/4)."""
    x = x_nchw.astype(jnp.float32)
    # conv biases are NOT passed to the kernels: a pre-BN per-channel bias
    # cancels exactly under training-mode BatchNorm.
    y0 = _conv_bn_layer(x, params["conv0_w"], params["norm0_gamma"],
                        params["norm0_beta"], apply_gelu=True)       # NCHW
    y1 = _conv_bn_layer(y0, params["conv1_w"], params["norm1_gamma"],
                        params["norm1_beta"], apply_gelu=False)      # NCHW
    B, C, H2, W2 = y1.shape
    # == PyTorch x.flatten(2).permute(0, 2, 1)
    return jnp.transpose(y1.reshape(B, C, H2 * W2), (0, 2, 1)), H2, W2


# -----------------------------------------------------------------------------
# Pure-JAX reference (mirrors the PyTorch module incl. conv bias)
# -----------------------------------------------------------------------------
def _reference_forward(params, x_nchw):
    def conv(x, w, b):
        y = jax.lax.conv_general_dilated(
            x, w, window_strides=(2, 2), padding=((1, 1), (1, 1)),
            dimension_numbers=("NCHW", "OIHW", "NCHW"))
        return y + b.reshape(1, -1, 1, 1)

    def bn(y, g, b):
        mean = jnp.mean(y, axis=(0, 2, 3), keepdims=True)
        var = jnp.mean((y - mean) ** 2, axis=(0, 2, 3), keepdims=True)
        return (y - mean) * jax.lax.rsqrt(var + BN_EPS) * g.reshape(1, -1, 1, 1) \
            + b.reshape(1, -1, 1, 1)

    y = conv(x_nchw, params["conv0_w"], params["conv0_b"])
    y = bn(y, params["norm0_gamma"], params["norm0_beta"])
    y = 0.5 * y * (1.0 + jax.lax.erf(y * jnp.float32(1.0 / math.sqrt(2.0))))
    y = conv(y, params["conv1_w"], params["conv1_b"])
    y = bn(y, params["norm1_gamma"], params["norm1_beta"])
    B, C, H, W = y.shape
    return jnp.transpose(y.reshape(B, C, H * W), (0, 2, 1)), H, W


if __name__ == "__main__":
    key = jax.random.PRNGKey(0)
    k_x, k_p = jax.random.split(key)

    B, Cin, H, W = 2, 4, 16, 16
    Cout = 32
    x = jax.random.normal(k_x, (B, Cin, H, W), jnp.float32)
    params = init_stemconv_params(k_p, Cin, Cout)

    out, H2, W2 = stemconv_forward(params, x)
    out = jax.block_until_ready(out)

    assert out.shape == (B, (H // 4) * (W // 4), Cout), out.shape
    assert (H2, W2) == (H // 4, W // 4)
    assert bool(jnp.all(jnp.isfinite(out)))

    ref, rH, rW = _reference_forward(params, x)
    assert (rH, rW) == (H2, W2)
    max_err = float(jnp.max(jnp.abs(out - ref)))
    assert max_err < 2e-3, f"mismatch vs reference: {max_err}"

    print("KERNEL_OK")
</pallas_src>

<mosaic_0001>
module attributes {stable_mosaic.version = 11 : i64} {
  func.func @_conv_stats_kernel(%arg0: i32, %arg1: i32, %arg2: memref<1x1x16x128xf32, #tpu.memory_space<vmem>>, %arg3: memref<64x16xf32, #tpu.memory_space<vmem>>, %arg4: memref<1x72xf32, #tpu.memory_space<vmem>>, %arg5: memref<1x16x2xf32, #tpu.memory_space<vmem>>) attributes {dimension_semantics = [#tpu.dimension_semantics<parallel>, #tpu.dimension_semantics<arbitrary>], iteration_bounds = array<i64: 2, 1>, scalar_prefetch = 0 : i64, scratch_operands = 0 : i64, tpu.core_type = #tpu.core_type<tc>, window_params = [{transform_indices = @transform_0, window_bounds = array<i64: 1, 1, 16, 128>}, {pipeline_mode = #tpu.pipeline_mode<synchronous>, transform_indices = @transform_1, window_bounds = array<i64: 64, 16>}, {pipeline_mode = #tpu.pipeline_mode<synchronous>, transform_indices = @transform_2, window_bounds = array<i64: 1, 72>}, {transform_indices = @transform_3, window_bounds = array<i64: 1, 16, 2>}]} {
    %c0 = arith.constant 0 : index
    %c0_0 = arith.constant 0 : index
    %c0_1 = arith.constant 0 : index
    %c0_2 = arith.constant 0 : index
    %0 = vector.load %arg2[%c0, %c0_0, %c0_1, %c0_2] : memref<1x1x16x128xf32, #tpu.memory_space<vmem>>, vector<1x1x16x128xf32>
    %1 = vector.shape_cast %0 : vector<1x1x16x128xf32> to vector<16x128xf32>
    %c0_3 = arith.constant 0 : index
    %c0_4 = arith.constant 0 : index
    %2 = vector.load %arg3[%c0_3, %c0_4] : memref<64x16xf32, #tpu.memory_space<vmem>>, vector<64x16xf32>
    %cst = arith.constant dense<0.000000e+00> : vector<64x128xf32>
    %3 = tpu.matmul %2, %1, %cst {dimension_numbers = #tpu.dot_dimension_numbers<[1], [0], [0], [1], [0, 0, 1, 1], [], []>} : vector<64x16xf32>, vector<16x128xf32>, vector<64x128xf32> -> vector<64x128xf32>
    %4 = vector.extract_strided_slice %3 {offsets = [0, 0], sizes = [16, 72], strides = [1, 1]} : vector<64x128xf32> to vector<16x72xf32>
    %5 = vector.extract_strided_slice %3 {offsets = [16, 1], sizes = [16, 72], strides = [1, 1]} : vector<64x128xf32> to vector<16x72xf32>
    %6 = arith.addf %4, %5 : vector<16x72xf32>
    %7 = vector.extract_strided_slice %3 {offsets = [32, 9], sizes = [16, 72], strides = [1, 1]} : vector<64x128xf32> to vector<16x72xf32>
    %8 = arith.addf %6, %7 : vector<16x72xf32>
    %9 = vector.extract_strided_slice %3 {offsets = [48, 10], sizes = [16, 72], strides = [1, 1]} : vector<64x128xf32> to vector<16x72xf32>
    %10 = arith.addf %8, %9 : vector<16x72xf32>
    %c0_5 = arith.constant 0 : index
    %c0_6 = arith.constant 0 : index
    %11 = vector.load %arg4[%c0_5, %c0_6] : memref<1x72xf32, #tpu.memory_space<vmem>>, vector<1x72xf32>
    %12 = vector.broadcast %11 : vector<1x72xf32> to vector<16x72xf32>
    %13 = arith.mulf %10, %12 : vector<16x72xf32>
    %cst_7 = arith.constant dense<0.000000e+00> : vector<16xf32>
    %14 = vector.multi_reduction <add>, %13, %cst_7 [1] : vector<16x72xf32> to vector<16xf32>
    %15 = vector.shape_cast %14 : vector<16xf32> to vector<16x1xf32>
    %16 = arith.mulf %13, %10 : vector<16x72xf32>
    %cst_8 = arith.constant dense<0.000000e+00> : vector<16xf32>
    %17 = vector.multi_reduction <add>, %16, %cst_8 [1] : vector<16x72xf32> to vector<16xf32>
    %18 = vector.shape_cast %17 : vector<16xf32> to vector<16x1xf32>
    %c0_i32 = arith.constant 0 : i32
    %19 = arith.cmpi eq, %arg1, %c0_i32 : i32
    %20 = arith.extui %19 : i1 to i32
    %c0_i32_9 = arith.constant 0 : i32
    %21 = arith.cmpi ne, %20, %c0_i32_9 : i32
    scf.if %21 {
      %cst_21 = arith.constant 0.000000e+00 : f32
      %34 = vector.broadcast %cst_21 : f32 to vector<1x16x2xf32>
      %c0_22 = arith.constant 0 : index
      %c0_23 = arith.constant 0 : index
      %c0_24 = arith.constant 0 : index
      %35 = vector.load %arg5[%c0_22, %c0_23, %c0_24] : memref<1x16x2xf32, #tpu.memory_space<vmem>>, vector<1x16x2xf32>
      tpu.vector_store %arg5[%c0_22, %c0_23, %c0_24], %34 {strides = array<i32>} : memref<1x16x2xf32, #tpu.memory_space<vmem>>, vector<1x16x2xf32>,
    } else {
    }
    %c0_10 = arith.constant 0 : index
    %c0_11 = arith.constant 0 : index
    %c0_12 = arith.constant 0 : index
    %22 = vector.load %arg5[%c0_10, %c0_11, %c0_12] : memref<1x16x2xf32, #tpu.memory_space<vmem>>, vector<1x16x1xf32>
    %23 = vector.shape_cast %22 : vector<1x16x1xf32> to vector<16x1xf32>
    %24 = arith.addf %23, %15 : vector<16x1xf32>
    %c0_13 = arith.constant 0 : index
    %c0_14 = arith.constant 0 : index
    %c0_15 = arith.constant 0 : index
    %25 = vector.load %arg5[%c0_13, %c0_14, %c0_15] : memref<1x16x2xf32, #tpu.memory_space<vmem>>, vector<1x16x1xf32>
    %26 = vector.shape_cast %25 : vector<1x16x1xf32> to vector<16x1xf32>
    %27 = vector.shape_cast %24 : vector<16x1xf32> to vector<1x16x1xf32>
    tpu.vector_store %arg5[%c0_13, %c0_14, %c0_15], %27 {strides = array<i32>} : memref<1x16x2xf32, #tpu.memory_space<vmem>>, vector<1x16x1xf32>,
    %c0_16 = arith.constant 0 : index
    %c0_17 = arith.constant 0 : index
    %c1 = arith.constant 1 : index
    %28 = vector.load %arg5[%c0_16, %c0_17, %c1] : memref<1x16x2xf32, #tpu.memory_space<vmem>>, vector<1x16x1xf32>
    %29 = vector.shape_cast %28 : vector<1x16x1xf32> to vector<16x1xf32>
    %30 = arith.addf %29, %18 : vector<16x1xf32>
    %c0_18 = arith.constant 0 : index
    %c0_19 = arith.constant 0 : index
    %c1_20 = arith.constant 1 : index
    %31 = vector.load %arg5[%c0_18, %c0_19, %c1_20] : memref<1x16x2xf32, #tpu.memory_space<vmem>>, vector<1x16x1xf32>
    %32 = vector.shape_cast %31 : vector<1x16x1xf32> to vector<16x1xf32>
    %33 = vector.shape_cast %30 : vector<16x1xf32> to vector<1x16x1xf32>
    tpu.vector_store %arg5[%c0_18, %c0_19, %c1_20], %33 {strides = array<i32>} : memref<1x16x2xf32, #tpu.memory_space<vmem>>, vector<1x16x1xf32>,
    return
  }
  func.func @transform_0(%arg0: i32, %arg1: i32) -> (i32, i32, i32, i32) {
    %c0_i32 = arith.constant 0 : i32
    %c0_i32_0 = arith.constant 0 : i32
    %c0_i32_1 = arith.constant 0 : i32
    return %arg0, %arg1, %c0_i32, %c0_i32_0 : i32, i32, i32, i32
  }
  func.func @transform_1(%arg0: i32, %arg1: i32) -> (i32, i32) {
    %c0_i32 = arith.constant 0 : i32
    %c0_i32_0 = arith.constant 0 : i32
    %c0_i32_1 = arith.constant 0 : i32
    return %c0_i32, %c0_i32_0 : i32, i32
  }
  func.func @transform_2(%arg0: i32, %arg1: i32) -> (i32, i32) {
    %c0_i32 = arith.constant 0 : i32
    %c0_i32_0 = arith.constant 0 : i32
    %c0_i32_1 = arith.constant 0 : i32
    return %c0_i32, %c0_i32_0 : i32, i32
  }
  func.func @transform_3(%arg0: i32, %arg1: i32) -> (i32, i32, i32) {
    %c0_i32 = arith.constant 0 : i32
    %c0_i32_0 = arith.constant 0 : i32
    %c0_i32_1 = arith.constant 0 : i32
    return %arg0, %c0_i32, %c0_i32_0 : i32, i32, i32
  }
}

</mosaic_0001>

<llo_original>
// kernel: tpu_custom_call.1
$region0: #{tpu_custom_call.1}
  #allocation0 [shape = 'u32[]', space=smem, size = 0x4, offset = 0x4, fixed_abs, tag = 'smem constant byte address 0x4 - core index']
  #allocation1 [shape = 'u32[144,128]{1,0:T(1,128)}', space=vmem, size = 0x12000, scoped, tag = 'internal scratch']
  %s0 = inlined_call_operand.vmem [shape: f32[2,1,16,128], index: 0, kind: input, shape index: {}]
  %s1 = inlined_call_operand.vmem [shape: f32[64,16], index: 1, kind: input, shape index: {}]
  %s2 = inlined_call_operand.vmem [shape: f32[1,72], index: 2, kind: input, shape index: {}]
  %s3 = inlined_call_operand.vmem [shape: f32[2,16,2], index: 3, kind: output, shape index: {}]
  %s4 = sld [smem:[#allocation0]]
  $region49: #{tpu_custom_call.1} parent=0
    _
  %s6 = ssub.s32 1, %s4
  %s7 = scalar_select 0, %s6, %s4
  loop: start=0, step=1, limit=4
  $region2: #{tpu_custom_call.1} parent=0 // loop_pre_header
    _
  $region3: #{tpu_custom_call.1} parent=0 // loop_header
    %s9 = sphi 0, %s13
    %p10 = scmp.ge.s32.totalorder %s9, 4
    %s16 = sphi 0, %s28
    %s17 = sphi 0, %s24
    %s18 = sphi 0, %s16
    %s19 = sphi 0, %s17
    %s20 = sphi 0, %s18
    %s21 = sphi 0, %s19
    %s33 = sphi 0, %s35
    %s36 = sphi 0, %s33
    %s37 = sphi 0, %s36
    %s53 = sphi 0, %s37
    %s57 = sphi 0, %s57
    %s59 = sphi 0, %s57
    %s60 = sphi 0, %s59
    %s74 = sphi 0, %s60
    %s78 = sphi 0, %s78
    %s80 = sphi 0, %s78
    %s81 = sphi 0, %s80
    %s95 = sphi 0, %s81
    %s101 = sphi 0, %s103
    %s104 = sphi 0, %s101
    %s105 = sphi 0, %s104
    %s121 = sphi 0, %s105
  $region4: #{tpu_custom_call.1} parent=0 // loop_header_branch
    %12 = sbr.rel (%p10) target = $region8
  $region5: #{tpu_custom_call.1} parent=0 // loop_body
    %s14 = ssub.s32 %s9, 1
    %s15 = ssub.s32 %s9, 2
    %s22 = sadd.s32 1, %s17
    %p23 = scmp.ge.s32.totalorder %s22, 1
    %s24 = scalar_select %p23, 0, %s22
    %s25 = sadd.s32 1, %s16
    %s26 = scalar_select %p23, %s25, %s16
    %p27 = scmp.ge.s32.totalorder %s26, 2
    %s28 = scalar_select %p27, 0, %s26
    %s29 = ssub.s32 %s16, %s28
    %s30 = ssub.s32 %s17, %s24
    %s31 = sor.u32 %s29, %s30
    %p32 = scmp.eq.s32.totalorder %s31, 0
    %s34 = sadd.s32 %s33, 1
    %s35 = scalar_select %p32, %s33, %s34
    %p38 = pneg %p32
    %p39 = scmp.eq.s32.totalorder %s9, 1
    %p40 = por %p38, %p39
    %p41 = scmp.ne.s32.totalorder %s33, %s36
    %p42 = scmp.eq.s32.totalorder %s9, 0
    %p43 = por %p41, %p42
    %p44 = scmp.ne.s32.totalorder %s33, %s36
    %p45 = scmp.eq.s32.totalorder %s14, 1
    %p46 = por %p44, %p45
    %p47 = scmp.ne.s32.totalorder %s36, %s37
    %p48 = scmp.eq.s32.totalorder %s14, 0
    %p49 = por %p47, %p48
    %p50 = scmp.ne.s32.totalorder %s36, %s37
    %p51 = scmp.eq.s32.totalorder %s15, 1
    %p52 = por %p50, %p51
    %p54 = scmp.ne.s32.totalorder %s37, %s53
    %p55 = scmp.eq.s32.totalorder %s15, 0
    %p56 = por %p54, %p55
    %s58 = sadd.s32 %s57, 1
    %p61 = scmp.eq.s32.totalorder %s9, 1
    %p62 = scmp.ne.s32.totalorder %s57, %s59
    %p63 = scmp.eq.s32.totalorder %s9, 0
    %p64 = por %p62, %p63
    %p65 = scmp.ne.s32.totalorder %s57, %s59
    %p66 = scmp.eq.s32.totalorder %s14, 1
    %p67 = por %p65, %p66
    %p68 = scmp.ne.s32.totalorder %s59, %s60
    %p69 = scmp.eq.s32.totalorder %s14, 0
    %p70 = por %p68, %p69
    %p71 = scmp.ne.s32.totalorder %s59, %s60
    %p72 = scmp.eq.s32.totalorder %s15, 1
    %p73 = por %p71, %p72
    %p75 = scmp.ne.s32.totalorder %s60, %s74
    %p76 = scmp.eq.s32.totalorder %s15, 0
    %p77 = por %p75, %p76
    %s79 = sadd.s32 %s78, 1
    %p82 = scmp.eq.s32.totalorder %s9, 1
    %p83 = scmp.ne.s32.totalorder %s78, %s80
    %p84 = scmp.eq.s32.totalorder %s9, 0
    %p85 = por %p83, %p84
    %p86 = scmp.ne.s32.totalorder %s78, %s80
    %p87 = scmp.eq.s32.totalorder %s14, 1
    %p88 = por %p86, %p87
    %p89 = scmp.ne.s32.totalorder %s80, %s81
    %p90 = scmp.eq.s32.totalorder %s14, 0
    %p91 = por %p89, %p90
    %p92 = scmp.ne.s32.totalorder %s80, %s81
    %p93 = scmp.eq.s32.totalorder %s15, 1
    %p94 = por %p92, %p93
    %p96 = scmp.ne.s32.totalorder %s81, %s95
    %p97 = scmp.eq.s32.totalorder %s15, 0
    %p98 = por %p96, %p97
    %s99 = ssub.s32 %s16, %s28
    %p100 = scmp.eq.s32.totalorder %s99, 0
    %s102 = sadd.s32 %s101, 1
    %s103 = scalar_select %p100, %s101, %s102
    %p106 = pneg %p100
    %p107 = scmp.eq.s32.totalorder %s9, 1
    %p108 = por %p106, %p107
    %p109 = scmp.ne.s32.totalorder %s101, %s104
    %p110 = scmp.eq.s32.totalorder %s9, 0
    %p111 = por %p109, %p110
    %p112 = scmp.ne.s32.totalorder %s101, %s104
    %p113 = scmp.eq.s32.totalorder %s14, 1
    %p114 = por %p112, %p113
    %p115 = scmp.ne.s32.totalorder %s104, %s105
    %p116 = scmp.eq.s32.totalorder %s14, 0
    %p117 = por %p115, %p116
    %p118 = scmp.ne.s32.totalorder %s104, %s105
    %p119 = scmp.eq.s32.totalorder %s15, 1
    %p120 = por %p118, %p119
    %p122 = scmp.ne.s32.totalorder %s105, %s121
    %p123 = scmp.eq.s32.totalorder %s15, 0
    %p124 = por %p122, %p123
    %p125 = scmp.le.s32.totalorder 1, %s9
    %p126 = scmp.lt.s32.totalorder %s9, 3
    %p127 = pnand %p125, %p126
    %p128 = pneg %p127
    // Predicated region
    $region9: #{tpu_custom_call.1} parent=5 // pred_check
      _
    $region10: #{tpu_custom_call.1} parent=5 // pred_check_branch
      %130 = sbr.rel (%p127) target = $region12
    $region11: #{tpu_custom_call.1} parent=5 // pred_region
      %s131 = ssub.s32 %s9, 1
      // Predicated region
      $region13: #{tpu_custom_call.1} parent=11 // pred_check
        %p132 = pneg %p70
      $region14: #{tpu_custom_call.1} parent=11 // pred_check_branch
        %134 = sbr.rel (%p132) target = $region16
      $region15: #{tpu_custom_call.1} parent=11 // pred_region
        _
      $region16: #{tpu_custom_call.1} parent=11 // pred_fallthru
        _
      // Predicated region
      $region17: #{tpu_custom_call.1} parent=11 // pred_check
        %p135 = pneg %p91
      $region18: #{tpu_custom_call.1} parent=11 // pred_check_branch
        %137 = sbr.rel (%p135) target = $region20
      $region19: #{tpu_custom_call.1} parent=11 // pred_region
        _
      $region20: #{tpu_custom_call.1} parent=11 // pred_fallthru
        _
    $region12: #{tpu_custom_call.1} parent=5 // pred_fallthru
      _
    %p138 = scmp.lt.s32.totalorder %s9, 2
    // Predicated region
    $region21: #{tpu_custom_call.1} parent=5 // pred_check
      %p139 = pneg %p138
    $region22: #{tpu_custom_call.1} parent=5 // pred_check_branch
      %141 = sbr.rel (%p139) target = $region24
    $region23: #{tpu_custom_call.1} parent=5 // pred_region
      // Predicated region
      $region25: #{tpu_custom_call.1} parent=23 // pred_check
        %p142 = pneg %p43
      $region26: #{tpu_custom_call.1} parent=23 // pred_check_branch
        %144 = sbr.rel (%p142) target = $region28
      $region27: #{tpu_custom_call.1} parent=23 // pred_region
        %p145 = scmp.lt.s32.totalorder %s16, 1
        %s146 = scalar_select %p145, %s16, 1
        %p147 = scmp.lt.s32.totalorder %s17, 0
        %s148 = scalar_select %p147, %s17, 0
        %s149 = smul.addr %s148, 2
        %s150 = smul.addr %s146, 2
        %s151 = sadd.s32 %s149, %s150
        %s152 = smul.addr %s151, 8
        %s153 = scalar_lea.vmem %s0, %s152
      $region28: #{tpu_custom_call.1} parent=23 // pred_fallthru
        _
    $region24: #{tpu_custom_call.1} parent=5 // pred_fallthru
      _
    %p154 = scmp.le.s32.totalorder 1, %s9
    %p155 = scmp.lt.s32.totalorder %s9, 3
    %p156 = pnand %p154, %p155
    %p157 = pneg %p156
    // Predicated region
    $region29: #{tpu_custom_call.1} parent=5 // pred_check
      _
    $region30: #{tpu_custom_call.1} parent=5 // pred_check_branch
      %159 = sbr.rel (%p156) target = $region32
    $region31: #{tpu_custom_call.1} parent=5 // pred_region
      %s160 = ssub.s32 %s9, 1
      %p161 = scmp.lt.s32.totalorder %s18, 1
      %s162 = scalar_select %p161, %s18, 1
      %p163 = scmp.lt.s32.totalorder %s19, 0
      %s164 = scalar_select %p163, %s19, 0
      %s165 = smul.addr %s164, 2
      %s166 = smul.addr %s162, 2
      %s167 = sadd.s32 %s165, %s166
      %s168 = smul.addr %s167, 8
      %s169 = scalar_lea.vmem %s0, %s168
      %p170 = pneg %p49
      %p171 = pneg %p46
      %p172 = pneg %p70
      %p173 = pneg %p67
      %p174 = pneg %p91
      %p175 = pneg %p88
      %p176 = pneg %p117
      %p177 = pneg %p114
      %p178 = scmp.lt.s32.totalorder %s18, 1
      %s179 = scalar_select %p178, %s18, 1
      %s180 = smul.addr %s179, 2
      %s181 = smul.addr %s180, 8
      %s182 = scalar_lea.vmem %s3, %s181
      %p183 = scmp.lt.s32.totalorder %s18, 1
      %s184 = scalar_select %p183, %s18, 1
      %p185 = scmp.lt.s32.totalorder %s19, 0
      %s186 = scalar_select %p185, %s19, 0
      %s187 = smul.addr %s186, 2
      %s188 = smul.addr %s184, 2
      %s189 = sadd.s32 %s187, %s188
      %s190 = smul.addr %s189, 8
      %s191 = scalar_lea.vmem %s0, %s190
      %p192 = scmp.lt.s32.totalorder %s18, 1
      %s193 = scalar_select %p192, %s18, 1
      %s194 = smul.addr %s193, 2
      %s195 = smul.addr %s194, 8
      %s196 = scalar_lea.vmem %s3, %s195
      %v197 = vld [vmem:[%s191] sm:$0xff]
      %v198 = vld [vmem:[%s191 + $0x8] sm:$0xff]
      %v199 = vld [vmem:[%s1] sm:$0xff]
      %v200 = vld [vmem:[%s1 + $0x8] sm:$0xff]
      %v201 = vld [vmem:[%s1 + $0x10] sm:$0xff]
      %v202 = vld [vmem:[%s1 + $0x18] sm:$0xff]
      %v203 = vld [vmem:[%s1 + $0x20] sm:$0xff]
      %v204 = vld [vmem:[%s1 + $0x28] sm:$0xff]
      %v205 = vld [vmem:[%s1 + $0x30] sm:$0xff]
      %v206 = vld [vmem:[%s1 + $0x38] sm:$0xff]
      %vm207 = vcmask 130048
      %v209 = vsel %vm207, %v199, 0
      %v212 = vsel %vm207, %v200, 0
      %v215 = vsel %vm207, %v201, 0
      %v218 = vsel %vm207, %v202, 0
      %v221 = vsel %vm207, %v203, 0
      %v224 = vsel %vm207, %v204, 0
      %v227 = vsel %vm207, %v205, 0
      %v230 = vsel %vm207, %v206, 0
      %232 = vmatprep.subr.mxu0 0.0
      %233 = vmatpush1.msra.mxu0 0.0
      %234 = vmatprep.subr.mxu0 0.0
      %235 = vmatpush1.msra.mxu0 0.0
      %236 = vmatprep.subr.mxu0 0.0
      %237 = vmatpush1.msra.mxu0 0.0
      %238 = vmatprep.subr.mxu0 0.0
      %239 = vmatpush1.msra.mxu0 0.0
      %240 = vmatprep.subr.mxu0 0.0
      %241 = vmatpush1.msra.mxu0 0.0
      %242 = vmatprep.subr.mxu0 0.0
      %243 = vmatpush1.msra.mxu0 0.0
      %244 = vmatprep.subr.mxu0 0.0
      %245 = vmatpush1.msra.mxu0 0.0
      %246 = vmatprep.subr.mxu0 0.0
      %247 = vmatpush1.msra.mxu0 0.0
      %248 = vmatprep.subr.mxu0 0.0
      %249 = vmatpush1.msra.mxu0 0.0
      %250 = vmatprep.subr.mxu0 0.0
      %251 = vmatpush1.msra.mxu0 0.0
      %252 = vmatprep.subr.mxu0 0.0
      %253 = vmatpush1.msra.mxu0 0.0
      %254 = vmatprep.subr.mxu0 0.0
      %255 = vmatpush1.msra.mxu0 0.0
      %256 = vmatprep.subr.mxu0 0.0
      %257 = vmatpush1.msra.mxu0 0.0
      %258 = vmatprep.subr.mxu0 0.0
      %259 = vmatpush1.msra.mxu0 0.0
      %260 = vmatprep.subr.mxu0 0.0
      %261 = vmatpush1.msra.mxu0 %v198
      %262 = vmatprep.subr.mxu0 0.0
      %263 = vmatpush1.msra.mxu0 %v197
      %264 = vmatprep.subr.mxu0 0.0
      %265 = vmatpush2.msra.mxu0 0.0
      %266 = vmatprep.subr.mxu0 0.0
      %267 = vmatpush2.msra.mxu0 0.0
      %268 = vmatprep.subr.mxu0 0.0
      %269 = vmatpush2.msra.mxu0 0.0
      %270 = vmatprep.subr.mxu0 0.0
      %271 = vmatpush2.msra.mxu0 0.0
      %272 = vmatprep.subr.mxu0 0.0
      %273 = vmatpush2.msra.mxu0 0.0
      %274 = vmatprep.subr.mxu0 0.0
      %275 = vmatpush2.msra.mxu0 0.0
      %276 = vmatprep.subr.mxu0 0.0
      %277 = vmatpush2.msra.mxu0 0.0
      %278 = vmatprep.subr.mxu0 0.0
      %279 = vmatpush2.msra.mxu0 0.0
      %280 = vmatprep.subr.mxu0 0.0
      %281 = vmatpush2.msra.mxu0 0.0
      %282 = vmatprep.subr.mxu0 0.0
      %283 = vmatpush2.msra.mxu0 0.0
      %284 = vmatprep.subr.mxu0 0.0
      %285 = vmatpush2.msra.mxu0 0.0
      %286 = vmatprep.subr.mxu0 0.0
      %287 = vmatpush2.msra.mxu0 0.0
      %288 = vmatprep.subr.mxu0 0.0
      %289 = vmatpush2.msra.mxu0 0.0
      %290 = vmatprep.subr.mxu0 0.0
      %291 = vmatpush2.msra.mxu0 0.0
      %292 = vmatprep.subr.mxu0 0.0
      %293 = vmatpush2.msra.mxu0 0.0
      %294 = vmatprep.subr.mxu0 0.0
      %295 = vmatpush2.msra.mxu0 0.0
      %296 = vmatprep.mubr.f32.mxu0 0.0
      %297 = vmatmul.mubr.f32.gmra.mxu0 %v209
      %v298 = vpop.f32.mrf.mxu0
      %v299 = vadd.f32 0.0, %v298
      %v300 = vpop.f32.mrf.mxu0
      %301 = vmatprep.mubr.f32.mxu0 0.0
      %302 = vmatmul.mubr.f32.gmra.mxu0 %v212
      %v303 = vpop.f32.mrf.mxu0
      %v304 = vadd.f32 0.0, %v303
      %v305 = vpop.f32.mrf.mxu0
      %306 = vmatprep.mubr.f32.mxu0 0.0
      %307 = vmatmul.mubr.f32.gmra.mxu0 %v215
      %v308 = vpop.f32.mrf.mxu0
      %v309 = vadd.f32 0.0, %v308
      %v310 = vpop.f32.mrf.mxu0
      %311 = vmatprep.mubr.f32.mxu0 0.0
      %312 = vmatmul.mubr.f32.gmra.mxu0 %v218
      %v313 = vpop.f32.mrf.mxu0
      %v314 = vadd.f32 0.0, %v313
      %v315 = vpop.f32.mrf.mxu0
      %316 = vmatprep.mubr.f32.mxu0 0.0
      %317 = vmatmul.mubr.f32.gmra.mxu0 %v221
      %v318 = vpop.f32.mrf.mxu0
      %v319 = vadd.f32 0.0, %v318
      %v320 = vpop.f32.mrf.mxu0
      %321 = vmatprep.mubr.f32.mxu0 0.0
      %322 = vmatmul.mubr.f32.gmra.mxu0 %v224
      %v323 = vpop.f32.mrf.mxu0
      %v324 = vadd.f32 0.0, %v323
      %v325 = vpop.f32.mrf.mxu0
      %326 = vmatprep.mubr.f32.mxu0 0.0
      %327 = vmatmul.mubr.f32.gmra.mxu0 %v227
      %v328 = vpop.f32.mrf.mxu0
      %v329 = vadd.f32 0.0, %v328
      %v330 = vpop.f32.mrf.mxu0
      %331 = vmatprep.mubr.f32.mxu0 0.0
      %332 = vmatmul.mubr.f32.gmra.mxu0 %v230
      %v333 = vpop.f32.mrf.mxu0
      %v334 = vadd.f32 0.0, %v333
      %v335 = vpop.f32.mrf.mxu0
      %336 = vdwg.mxu0
      %339 = vrot.lane.b32.xlu0 %v309, 127
      %v340 = vpop.permute.xlu0 %339
      %341 = vrot.lane.b32.xlu0 %v314, 127
      %v342 = vpop.permute.xlu0 %341
      %v345 = vadd.f32 %v299, %v340
      %v346 = vadd.f32 %v304, %v342
      %349 = vrot.lane.b32.xlu0 %v319, 119
      %v350 = vpop.permute.xlu0 %349
      %351 = vrot.lane.b32.xlu0 %v324, 119
      %v352 = vpop.permute.xlu0 %351
      %v355 = vadd.f32 %v345, %v350
      %v356 = vadd.f32 %v346, %v352
      %359 = vrot.lane.b32.xlu0 %v329, 118
      %v360 = vpop.permute.xlu0 %359
      %361 = vrot.lane.b32.xlu0 %v334, 118
      %v362 = vpop.permute.xlu0 %361
      %v365 = vadd.f32 %v355, %v360
      %v366 = vadd.f32 %v356, %v362
      %v367 = vld [vmem:[%s2] sm:$0x1]
      %v369 = vlaneseq
      %v370 = vshrl.u32 %v369, 7
      %v371 = vsub.s32 0, %v370
      %v372 = vrot.slane %v367, %v371
      %v374 = vmul.f32 %v365, %v372
      %v375 = vmul.f32 %v366, %v372
      %vm376 = vcmask 588800
      %v377 = vsel %vm376, %v374, 0.0
      %378 = vadd.xlane.f32.xlu0 %v377
      %v379 = vpop.xlane.xlu0 %378
      %v380 = vsel %vm376, %v375, 0.0
      %381 = vadd.xlane.f32.xlu0 %v380
      %v382 = vpop.xlane.xlu0 %381
      %v383 = vmul.f32 %v374, %v365
      %v384 = vmul.f32 %v375, %v366
      %v385 = vsel %vm376, %v383, 0.0
      %386 = vadd.xlane.f32.xlu0 %v385
      %v387 = vpop.xlane.xlu0 %386
      %v388 = vsel %vm376, %v384, 0.0
      %389 = vadd.xlane.f32.xlu0 %v388
      %v390 = vpop.xlane.xlu0 %389
      %p391 = scmp.eq.s32.totalorder %s19, 0
      // Predicated region
      $region33: #{tpu_custom_call.1} parent=31 // pred_check
        %p392 = pneg %p391
      $region34: #{tpu_custom_call.1} parent=31 // pred_check_branch
        %394 = sbr.rel (%p392) target = $region36
      $region35: #{tpu_custom_call.1} parent=31 // pred_region
        %vm395 = vcmask 15360
        %396 = vst.msk [vmem:[%s196] sm:$0xff] %vm395, 0.0
        %397 = vst.msk [vmem:[%s196 + $0x8] sm:$0xff] %vm395, 0.0
      $region36: #{tpu_custom_call.1} parent=31 // pred_fallthru
        _
      %v398 = vld [vmem:[%s196] sm:$0xff]
      %v399 = vld [vmem:[%s196 + $0x8] sm:$0xff]
      %v400 = vadd.f32 %v398, %v379
      %v401 = vadd.f32 %v399, %v382
      %vm402 = vcmask 7168
      %403 = vst.msk [vmem:[%s196] sm:$0xff] %vm402, %v400
      %404 = vst.msk [vmem:[%s196 + $0x8] sm:$0xff] %vm402, %v401
      %v405 = vld [vmem:[%s196] sm:$0xff]
      %v406 = vld [vmem:[%s196 + $0x8] sm:$0xff]
      %v407 = vadd.f32 %v405, %v387
      %v408 = vadd.f32 %v406, %v390
      %vm409 = vcmask 15368
      %410 = vst.msk [vmem:[%s196] sm:$0xff] %vm409, %v407
      %411 = vst.msk [vmem:[%s196 + $0x8] sm:$0xff] %vm409, %v408
      %p412 = scmp.lt.s32.totalorder %s18, 1
      %s413 = scalar_select %p412, %s18, 1
      %s414 = smul.addr %s413, 2
      %s415 = smul.addr %s414, 8
      %s416 = scalar_lea.vmem %s3, %s415
      // Predicated region
      $region37: #{tpu_custom_call.1} parent=31 // pred_check
        %p417 = pneg %p114
      $region38: #{tpu_custom_call.1} parent=31 // pred_check_branch
        %419 = sbr.rel (%p417) target = $region40
      $region39: #{tpu_custom_call.1} parent=31 // pred_region
        _
      $region40: #{tpu_custom_call.1} parent=31 // pred_fallthru
        _
    $region32: #{tpu_custom_call.1} parent=5 // pred_fallthru
      _
    %p420 = scmp.le.s32.totalorder 2, %s9
    // Predicated region
    $region41: #{tpu_custom_call.1} parent=5 // pred_check
      %p421 = pneg %p420
    $region42: #{tpu_custom_call.1} parent=5 // pred_check_branch
      %423 = sbr.rel (%p421) target = $region44
    $region43: #{tpu_custom_call.1} parent=5 // pred_region
      %s424 = ssub.s32 %s9, 2
      // Predicated region
      $region45: #{tpu_custom_call.1} parent=43 // pred_check
        %p425 = pneg %p120
      $region46: #{tpu_custom_call.1} parent=43 // pred_check_branch
        %427 = sbr.rel (%p425) target = $region48
      $region47: #{tpu_custom_call.1} parent=43 // pred_region
        %p428 = scmp.lt.s32.totalorder %s20, 1
        %s429 = scalar_select %p428, %s20, 1
        %s430 = smul.addr %s429, 2
        %s431 = smul.addr %s430, 8
        %s432 = scalar_lea.vmem %s3, %s431
      $region48: #{tpu_custom_call.1} parent=43 // pred_fallthru
        _
    $region44: #{tpu_custom_call.1} parent=5 // pred_fallthru
      _
  $region6: #{tpu_custom_call.1} parent=0 // loop_footer
    %s13 = sadd.s32 1, %s9
  $region7: #{tpu_custom_call.1} parent=0 // loop_footer_branch
    %8 = sbr.rel target = $region3
  $region8: #{tpu_custom_call.1} parent=0 // loop_exit
    _

</llo_original>
